<compile_context>
chip_gen: v5e
topology: v5e:2x2
jax: 0.10.0
libtpu: 0.0.40
codegen_flags: <defaults>
</compile_context>

<pallas_src>
import jax
import jax.numpy as jnp
from jax.experimental import pallas as pl
from jax.experimental.pallas import tpu as pltpu


def budding_tree_kernel(x_ref, w_ref, b_ref, noise_ref, o_ref):
    O = o_ref.shape[-1]

    # Single fused MXU push: columns are [leaf0 (O) | leaf1 (O) | leaf2 (O) | gate (1)].
    y = jnp.dot(x_ref[...], w_ref[...], preferred_element_type=jnp.float32)
    y = y + b_ref[...]                                        # [B, 3*O + 1]

    r0 = y[:, 0:O]
    r1 = y[:, O:2 * O]
    r2 = y[:, 2 * O:3 * O]
    gate_logit = y[:, 3 * O:3 * O + 1] + noise_ref[:, 1:2]    # [B, 1] (x-dependent)
    gamma_logit = noise_ref[:, 0:1]                           # [B, 1] (x-independent)

    # Hard Gumbel-sigmoid forward values as nested selects ([B,1] conds broadcast).
    o_ref[...] = jnp.where(gamma_logit > 0.0,
                           jnp.where(gate_logit > 0.0, r1, r2),
                           r0)


def budding_tree_forward(x, leaf_w, leaf_b, gate_w, gate_b, gamma0, u,
                         *, max_tile_b=256):
    B, F = x.shape
    O = leaf_w.shape[-1]
    nf = 3 * O + 1

    # --- weight fusion (wrapper-side layout plumbing, not compute hoisting) ---
    w_fused = jnp.concatenate(
        [leaf_w[0], leaf_w[1], leaf_w[2], gate_w.reshape(F, 1)], axis=1)          # [F, 3*O+1]
    b_fused = jnp.concatenate(
        [leaf_b.reshape(3 * O), jnp.reshape(gate_b, (1,))]).reshape(1, nf)        # [1, 3*O+1]

    # --- Gumbel noise precomputed outside the kernel (these are inputs) ---
    g = -jnp.log(-jnp.log(u))                                                     # [B, 4]
    gamma_logit = gamma0 + g[:, 0:1] - g[:, 1:2]        # x-independent threshold [B, 1]
    d_gate = g[:, 2:3] - g[:, 3:4]                      # gate noise delta        [B, 1]
    noise = jnp.concatenate([gamma_logit, d_gate], axis=1).astype(jnp.float32)    # [B, 2]

    # --- batch grid: single block at toy sizes, tiled + 'parallel' at scale ---
    tile_b = B if B <= max_tile_b else max_tile_b
    grid = (pl.cdiv(B, tile_b),)

    return pl.pallas_call(
        budding_tree_kernel,
        out_shape=jax.ShapeDtypeStruct((B, O), jnp.float32),
        grid_spec=pltpu.PrefetchScalarGridSpec(
            num_scalar_prefetch=0,
            grid=grid,
            in_specs=[
                pl.BlockSpec((tile_b, F), lambda i: (i, 0)),    # x tile
                pl.BlockSpec((F, nf), lambda i: (0, 0)),        # fused weight (resident)
                pl.BlockSpec((1, nf), lambda i: (0, 0)),        # fused bias   (resident)
                pl.BlockSpec((tile_b, 2), lambda i: (i, 0)),    # noise tile
            ],
            out_specs=pl.BlockSpec((tile_b, O), lambda i: (i, 0)),
        ),
        compiler_params=pltpu.CompilerParams(
            dimension_semantics=("parallel",)),
    )(x, w_fused, b_fused, noise)


def _xavier_normal(key, shape):
    fan_out, fan_in = shape
    std = (2.0 / (fan_in + fan_out)) ** 0.5
    return std * jax.random.normal(key, shape, dtype=jnp.float32)


def _perturb(key, t):
    # utils.return_perturbed(t, 0.95, 1.05): elementwise uniform scale factor
    return t * jax.random.uniform(key, t.shape, minval=0.95, maxval=1.05,
                                  dtype=jnp.float32)


def init_params(key, in_features, out_features):
    k_gw, k_lw, k_p1g, k_p1l, k_p2g, k_p2l = jax.random.split(key, 6)
    # node '0'
    gate_w0 = _xavier_normal(k_gw, (1, in_features)).reshape(-1)       # [F]
    gate_b0 = jnp.float32(0.0)
    leaf_w0 = _xavier_normal(k_lw, (out_features, in_features)).T      # [F, O]
    leaf_b0 = jnp.zeros((out_features,), jnp.float32)
    # children '1', '2' are perturbed copies of the parent
    leaf_w1 = _perturb(k_p1l, leaf_w0)
    leaf_w2 = _perturb(k_p2l, leaf_w0)
    leaf_b1 = _perturb(k_p1g, leaf_b0)      # zeros stay zeros
    leaf_b2 = _perturb(k_p2g, leaf_b0)
    leaf_w = jnp.stack([leaf_w0, leaf_w1, leaf_w2])                    # [3, F, O]
    leaf_b = jnp.stack([leaf_b0, leaf_b1, leaf_b2])[:, None, :]        # [3, 1, O]
    gamma0 = jnp.float32(1.0)
    return leaf_w, leaf_b, gate_w0.reshape(-1, 1), gate_b0, gamma0


def reference_forward(x, leaf_w, leaf_b, gate_w, gate_b, gamma0, u):
    r = jnp.einsum("bf,kfo->kbo", x, leaf_w) + leaf_b
    gate = x @ gate_w + gate_b
    g = -jnp.log(-jnp.log(u))
    gamma_z = ((gamma0 + g[:, 0:1] - g[:, 1:2]) > 0).astype(jnp.float32)
    gate_z = ((gate + g[:, 2:3] - g[:, 3:4]) > 0).astype(jnp.float32)
    return (1 - gamma_z) * r[0] + gamma_z * (gate_z * r[1] + (1 - gate_z) * r[2])


if __name__ == "__main__":
    in_features, out_features = 32, 16
    B = 8
    # tau must exceed sigmoid(1.0)=0.731 so children '1','2' are leaves (the only
    # configuration for which the reference forward is well-defined after init).
    tau = 0.8  # noqa: F841  (documented module hyperparameter)
    # TODO(synk): dynamic tree growth (update_nodes), kl_loss and clamp_gamma are
    # host-side training logic with no forward-pass kernel equivalent.

    key = jax.random.PRNGKey(0)
    k_param, k_x, k_u = jax.random.split(key, 3)
    leaf_w, leaf_b, gate_w, gate_b, gamma0 = init_params(k_param, in_features,
                                                         out_features)
    x = jax.random.normal(k_x, (B, in_features), dtype=jnp.float32)
    # Gumbel-sigmoid uniform noise (generated once; glue, not the hot path).
    u = jax.random.uniform(k_u, (B, 4), minval=1e-6, maxval=1.0 - 1e-6,
                           dtype=jnp.float32)

    out = budding_tree_forward(x, leaf_w, leaf_b, gate_w, gate_b, gamma0, u)
    out = jax.block_until_ready(out)

    ref = reference_forward(x, leaf_w, leaf_b, gate_w, gate_b, gamma0, u)
    assert out.shape == (B, out_features)
    assert jnp.allclose(out, ref, atol=1e-5, rtol=1e-5)
    print("KERNEL_OK")
</pallas_src>

<mosaic_0001>
module attributes {stable_mosaic.version = 11 : i64} {
  func.func @budding_tree_kernel(%arg0: i32, %arg1: memref<8x32xf32, #tpu.memory_space<vmem>>, %arg2: memref<32x49xf32, #tpu.memory_space<vmem>>, %arg3: memref<1x49xf32, #tpu.memory_space<vmem>>, %arg4: memref<8x2xf32, #tpu.memory_space<vmem>>, %arg5: memref<8x16xf32, #tpu.memory_space<vmem>>) attributes {dimension_semantics = [#tpu.dimension_semantics<parallel>], iteration_bounds = array<i64: 1>, scalar_prefetch = 0 : i64, scratch_operands = 0 : i64, tpu.core_type = #tpu.core_type<tc>, window_params = [{transform_indices = @transform_0, window_bounds = array<i64: 8, 32>}, {pipeline_mode = #tpu.pipeline_mode<synchronous>, transform_indices = @transform_1, window_bounds = array<i64: 32, 49>}, {pipeline_mode = #tpu.pipeline_mode<synchronous>, transform_indices = @transform_2, window_bounds = array<i64: 1, 49>}, {transform_indices = @transform_3, window_bounds = array<i64: 8, 2>}, {transform_indices = @transform_4, window_bounds = array<i64: 8, 16>}]} {
    %c0 = arith.constant 0 : index
    %c0_0 = arith.constant 0 : index
    %0 = vector.load %arg1[%c0, %c0_0] : memref<8x32xf32, #tpu.memory_space<vmem>>, vector<8x32xf32>
    %c0_1 = arith.constant 0 : index
    %c0_2 = arith.constant 0 : index
    %1 = vector.load %arg2[%c0_1, %c0_2] : memref<32x49xf32, #tpu.memory_space<vmem>>, vector<32x49xf32>
    %cst = arith.constant dense<0.000000e+00> : vector<8x49xf32>
    %2 = tpu.matmul %0, %1, %cst {dimension_numbers = #tpu.dot_dimension_numbers<[1], [0], [0], [1], [0, 0, 1, 1], [], []>} : vector<8x32xf32>, vector<32x49xf32>, vector<8x49xf32> -> vector<8x49xf32>
    %c0_3 = arith.constant 0 : index
    %c0_4 = arith.constant 0 : index
    %3 = vector.load %arg3[%c0_3, %c0_4] : memref<1x49xf32, #tpu.memory_space<vmem>>, vector<1x49xf32>
    %4 = vector.broadcast %3 : vector<1x49xf32> to vector<8x49xf32>
    %5 = arith.addf %2, %4 : vector<8x49xf32>
    %6 = vector.extract_strided_slice %5 {offsets = [0, 0], sizes = [8, 16], strides = [1, 1]} : vector<8x49xf32> to vector<8x16xf32>
    %7 = vector.extract_strided_slice %5 {offsets = [0, 16], sizes = [8, 16], strides = [1, 1]} : vector<8x49xf32> to vector<8x16xf32>
    %8 = vector.extract_strided_slice %5 {offsets = [0, 32], sizes = [8, 16], strides = [1, 1]} : vector<8x49xf32> to vector<8x16xf32>
    %9 = vector.extract_strided_slice %5 {offsets = [0, 48], sizes = [8, 1], strides = [1, 1]} : vector<8x49xf32> to vector<8x1xf32>
    %c0_5 = arith.constant 0 : index
    %c1 = arith.constant 1 : index
    %10 = vector.load %arg4[%c0_5, %c1] : memref<8x2xf32, #tpu.memory_space<vmem>>, vector<8x1xf32>
    %11 = arith.addf %9, %10 : vector<8x1xf32>
    %c0_6 = arith.constant 0 : index
    %c0_7 = arith.constant 0 : index
    %12 = vector.load %arg4[%c0_6, %c0_7] : memref<8x2xf32, #tpu.memory_space<vmem>>, vector<8x1xf32>
    %cst_8 = arith.constant 0.000000e+00 : f32
    %13 = vector.broadcast %cst_8 : f32 to vector<8x1xf32>
    %14 = arith.cmpf ogt, %12, %13 : vector<8x1xf32>
    %cst_9 = arith.constant 0.000000e+00 : f32
    %15 = vector.broadcast %cst_9 : f32 to vector<8x1xf32>
    %16 = arith.cmpf ogt, %11, %15 : vector<8x1xf32>
    %17 = vector.shape_cast %16 : vector<8x1xi1> to vector<8x1xi1>
    %18 = vector.broadcast %17 : vector<8x1xi1> to vector<8x16xi1>
    %19 = arith.select %18, %7, %8 : vector<8x16xi1>, vector<8x16xf32>
    %20 = vector.shape_cast %14 : vector<8x1xi1> to vector<8x1xi1>
    %21 = vector.broadcast %20 : vector<8x1xi1> to vector<8x16xi1>
    %22 = arith.select %21, %19, %6 : vector<8x16xi1>, vector<8x16xf32>
    %c0_10 = arith.constant 0 : index
    %c0_11 = arith.constant 0 : index
    %23 = vector.load %arg5[%c0_10, %c0_11] : memref<8x16xf32, #tpu.memory_space<vmem>>, vector<8x16xf32>
    tpu.vector_store %arg5[%c0_10, %c0_11], %22 {strides = array<i32>} : memref<8x16xf32, #tpu.memory_space<vmem>>, vector<8x16xf32>,
    return
  }
  func.func @transform_0(%arg0: i32) -> (i32, i32) {
    %c0_i32 = arith.constant 0 : i32
    %c0_i32_0 = arith.constant 0 : i32
    return %arg0, %c0_i32 : i32, i32
  }
  func.func @transform_1(%arg0: i32) -> (i32, i32) {
    %c0_i32 = arith.constant 0 : i32
    %c0_i32_0 = arith.constant 0 : i32
    %c0_i32_1 = arith.constant 0 : i32
    return %c0_i32, %c0_i32_0 : i32, i32
  }
  func.func @transform_2(%arg0: i32) -> (i32, i32) {
    %c0_i32 = arith.constant 0 : i32
    %c0_i32_0 = arith.constant 0 : i32
    %c0_i32_1 = arith.constant 0 : i32
    return %c0_i32, %c0_i32_0 : i32, i32
  }
  func.func @transform_3(%arg0: i32) -> (i32, i32) {
    %c0_i32 = arith.constant 0 : i32
    %c0_i32_0 = arith.constant 0 : i32
    return %arg0, %c0_i32 : i32, i32
  }
  func.func @transform_4(%arg0: i32) -> (i32, i32) {
    %c0_i32 = arith.constant 0 : i32
    %c0_i32_0 = arith.constant 0 : i32
    return %arg0, %c0_i32 : i32, i32
  }
}

</mosaic_0001>

<llo_original>
// kernel: tpu_custom_call.1
$region0: #{tpu_custom_call.1}
  #allocation0 [shape = 'u32[]', space=smem, size = 0x4, offset = 0x4, fixed_abs, tag = 'smem constant byte address 0x4 - core index']
  #allocation1 [shape = 'u32[72,128]{1,0:T(1,128)}', space=vmem, size = 0x9000, scoped, tag = 'internal scratch']
  %s0 = inlined_call_operand.vmem [shape: f32[8,32], index: 0, kind: input, shape index: {}]
  %s1 = inlined_call_operand.hbm [shape: f32[32,49], index: 1, kind: input, shape index: {}]
  %s2 = inlined_call_operand.vmem [shape: f32[1,49], index: 2, kind: input, shape index: {}]
  %s3 = inlined_call_operand.vmem [shape: f32[8,2], index: 3, kind: input, shape index: {}]
  %s4 = inlined_call_operand.hbm [shape: f32[8,16], index: 4, kind: output, shape index: {}]
  %s5 = sld [smem:[#allocation0]]
  $region30: #{tpu_custom_call.1} parent=0
    _
  %s7 = ssub.s32 1, %s5
  %s8 = scalar_select 0, %s7, %s5
  $region1: #{tpu_custom_call.1} parent=0
    #allocation2 [shape = 'u8[16384]{0}', space=vmem, size = 0x4000, scoped, tag = 'input window, operand 1, single buffered']
    #allocation3 [shape = 's32[1]{0}', space=sflag, size = 0x4, scoped, tag = 'scoped memory for tpu_custom_call.1']
    #allocation4 [shape = 's32[1]{0}', space=sflag, size = 0x4, scoped, tag = 'scoped memory for tpu_custom_call.1']
    #allocation5 [shape = 'u8[4096]{0}', space=vmem, size = 0x1000, scoped, tag = 'output window, operand 0, single buffered']
    %9 = vsyncpa [#allocation3], 0
    %10 = vsyncpa [#allocation4], 0
    // Predicated region
    $region2: #{tpu_custom_call.1} parent=1 // pred_check
      _
    $region3: #{tpu_custom_call.1} parent=1 // pred_check_branch
      %12 = sbr.rel (0) target = $region5
    $region4: #{tpu_custom_call.1} parent=1 // pred_region
      _
    $region5: #{tpu_custom_call.1} parent=1 // pred_fallthru
      _
    // Predicated region
    $region6: #{tpu_custom_call.1} parent=1 // pred_check
      _
    $region7: #{tpu_custom_call.1} parent=1 // pred_check_branch
      %14 = sbr.rel (0) target = $region9
    $region8: #{tpu_custom_call.1} parent=1 // pred_region
      %16 = vsyncadd [#allocation3], 0
      %s17 = sshll.u32 %s1, 4
      %s18 = int_to_ptr.hbm [resolvable:$true] %s17
      %s19 = sshll.u32 [#allocation2], 4
      %s20 = int_to_ptr.vmem [resolvable:$true] %s19
      %25 = dma.hbm_to_vmem [thread:$0]  %s18, 512, %s20, [#allocation3], 128, 128, 8
    $region9: #{tpu_custom_call.1} parent=1 // pred_fallthru
      _
    // Predicated region
    $region10: #{tpu_custom_call.1} parent=1 // pred_check
      _
    $region11: #{tpu_custom_call.1} parent=1 // pred_check_branch
      %27 = sbr.rel (0) target = $region13
    $region12: #{tpu_custom_call.1} parent=1 // pred_region
      _
    $region13: #{tpu_custom_call.1} parent=1 // pred_fallthru
      _
    // Predicated region
    $region14: #{tpu_custom_call.1} parent=1 // pred_check
      _
    $region15: #{tpu_custom_call.1} parent=1 // pred_check_branch
      %29 = sbr.rel (0) target = $region17
    $region16: #{tpu_custom_call.1} parent=1 // pred_region
      _
    $region17: #{tpu_custom_call.1} parent=1 // pred_fallthru
      _
    // Predicated region
    $region18: #{tpu_custom_call.1} parent=1 // pred_check
      _
    $region19: #{tpu_custom_call.1} parent=1 // pred_check_branch
      %31 = sbr.rel (0) target = $region21
    $region20: #{tpu_custom_call.1} parent=1 // pred_region
      %33 = dma.done [#allocation3], 512
    $region21: #{tpu_custom_call.1} parent=1 // pred_fallthru
      _
    %v34 = vld [vmem:[%s0] sm:$0xff]
    %v35 = vld [vmem:[#allocation2] sm:$0xff]
    %v36 = vld [vmem:[#allocation2 + $0x8] sm:$0xff]
    %v37 = vld [vmem:[#allocation2 + $0x10] sm:$0xff]
    %v38 = vld [vmem:[#allocation2 + $0x18] sm:$0xff]
    %v39 = vld [vmem:[%s2] sm:$0x1]
    %v41 = vperm.slane %v39, 0
    %vm43 = vcmask 261120
    %v45 = vsel %vm43, %v34, 0
    %47 = vmatpush.msra.mxu0 0.0
    %48 = vmatpush.msra.mxu0 0.0
    %49 = vmatpush.msra.mxu0 0.0
    %50 = vmatpush.msra.mxu0 0.0
    %51 = vmatpush.msra.mxu0 0.0
    %52 = vmatpush.msra.mxu0 0.0
    %53 = vmatpush.msra.mxu0 0.0
    %54 = vmatpush.msra.mxu0 0.0
    %55 = vmatpush.msra.mxu0 0.0
    %56 = vmatpush.msra.mxu0 0.0
    %57 = vmatpush.msra.mxu0 0.0
    %58 = vmatpush.msra.mxu0 0.0
    %59 = vmatpush.msra.mxu0 %v38
    %60 = vmatpush.msra.mxu0 %v37
    %61 = vmatpush.msra.mxu0 %v36
    %62 = vmatpush.msra.mxu0 %v35
    %63 = vmatmul.f32.gmra.mxu0 %v45
    %v64 = vpop.f32.mrf.mxu0
    %v65 = vadd.f32 %v41, %v64
    %66 = vdwg.mxu0
    %v67 = vld [vmem:[%s3] sm:$0xff]
    %69 = vrot.lane.b32.xlu0 %v67, 47
    %v70 = vpop.permute.xlu0 %69
    %v72 = vadd.f32 %v65, %v70
    %vm73 = vcmp.gt.f32.partialorder %v67, 0.0
    %vm74 = vcmp.gt.f32.partialorder %v72, 0.0
    %v75 = vsel %vm74, 1, 0
    %76 = vset.pattern.permute.xlu0 48
    %77 = vperm.xlu0 %76, %v75
    %v78 = vpop.permute.xlu0 %77
    %vm79 = vcmp.eq.s32.totalorder %v78, 1
    %81 = vrot.lane.b32.xlu0 %v65, 112
    %v82 = vpop.permute.xlu0 %81
    %v84 = vsel %vm79, %v65, %v82
    %v85 = vsel %vm73, 1, 0
    %86 = vset.pattern.permute.xlu0 0
    %87 = vperm.xlu0 %86, %v85
    %v88 = vpop.permute.xlu0 %87
    %vm89 = vcmp.eq.s32.totalorder %v88, 1
    %90 = vrot.lane.b32.xlu0 %v65, 16
    %v91 = vpop.permute.xlu0 %90
    %v93 = vsel %vm89, %v84, %v91
    %95 = vrot.lane.b32.xlu0 %v93, 112
    %v96 = vpop.permute.xlu0 %95
    %vm98 = vcmask 130048
    %99 = vst.msk [vmem:[#allocation5] sm:$0xff] %vm98, %v96
    // Predicated region
    $region22: #{tpu_custom_call.1} parent=1 // pred_check
      _
    $region23: #{tpu_custom_call.1} parent=1 // pred_check_branch
      %101 = sbr.rel (0) target = $region25
    $region24: #{tpu_custom_call.1} parent=1 // pred_region
      %103 = vsyncadd [#allocation4], 0
      %s105 = sshll.u32 [#allocation5], 4
      %s106 = int_to_ptr.vmem [resolvable:$true] %s105
      %s107 = sshll.u32 %s4, 4
      %s108 = int_to_ptr.hbm [resolvable:$true] %s107
      %110 = dma.vmem_to_hbm [thread:$0]  %s106, 128, %s108, [#allocation4]
    $region25: #{tpu_custom_call.1} parent=1 // pred_fallthru
      _
    // Predicated region
    $region26: #{tpu_custom_call.1} parent=1 // pred_check
      _
    $region27: #{tpu_custom_call.1} parent=1 // pred_check_branch
      %112 = sbr.rel (0) target = $region29
    $region28: #{tpu_custom_call.1} parent=1 // pred_region
      %114 = dma.done [#allocation4], 128
    $region29: #{tpu_custom_call.1} parent=1 // pred_fallthru
      _
    %115 = vsyncpa [#allocation3], 1
    %116 = vsyncpa [#allocation4], 1

</llo_original>
